<compile_context>
chip_gen: v6e
topology: v6e:2x2x1
jax: 0.10.0
libtpu: 0.0.40
codegen_flags: <defaults>
</compile_context>

<pallas_src>
import functools

import jax
import jax.numpy as jnp
from jax.experimental import pallas as pl
from jax.experimental.pallas import tpu as pltpu

LN_EPS = 1e-5  # nn.LayerNorm default
_INV_SQRT2 = 0.7071067811865476


def _round_up(x, m):
    return ((x + m - 1) // m) * m


def _ffn_kernel(x_ref, gamma_ref, beta_ref, w1_ref, b1_ref, w2_ref, b2_ref,
                o_ref, xn_ref, acc_ref, *, dim_orig, dim_pad):
    j = pl.program_id(1)

    # --- first hidden tile: LayerNorm once, stash bf16 xn, zero accumulator ---
    @pl.when(j == 0)
    def _():
        x = x_ref[...].astype(jnp.float32)                    # (tm, dim_pad)
        inv_d = jnp.float32(1.0 / dim_orig)
        mean = jnp.sum(x, axis=-1, keepdims=True) * inv_d     # pad cols are 0
        centered = x - mean
        if dim_orig != dim_pad:
            lane = jax.lax.broadcasted_iota(jnp.int32, (1, dim_pad), 1)
            centered_m = jnp.where(lane < dim_orig, centered, 0.0)
        else:
            centered_m = centered
        var = jnp.sum(centered_m * centered_m, axis=-1, keepdims=True) * inv_d
        xn = centered * jax.lax.rsqrt(var + LN_EPS)
        xn = xn * gamma_ref[...] + beta_ref[...]              # pad cols -> 0
        xn_ref[...] = xn.astype(jnp.bfloat16)
        acc_ref[...] = jnp.zeros_like(acc_ref)

    # --- Linear(dim -> th tile) + exact GELU (erf, matches nn.GELU()) ---
    h = jnp.dot(xn_ref[...], w1_ref[...],                     # bf16 x bf16 -> f32
                preferred_element_type=jnp.float32)
    h = h + b1_ref[...]
    h = 0.5 * h * (1.0 + jax.lax.erf(h * jnp.float32(_INV_SQRT2)))

    # --- Linear(th tile -> dim), accumulate in f32 ---
    acc_ref[...] += jnp.dot(h.astype(jnp.bfloat16), w2_ref[...],
                            preferred_element_type=jnp.float32)

    # --- last hidden tile: add output bias and write ---
    @pl.when(j == pl.num_programs(1) - 1)
    def _():
        o_ref[...] = (acc_ref[...] + b2_ref[...]).astype(o_ref.dtype)


@functools.partial(jax.jit, static_argnames=("tm", "th"))
def feed_forward(x, gamma, beta, w1, b1, w2, b2, *, tm=256, th=512):
    """x: (B, N, dim) -> (B, N, dim)."""
    B, N, dim = x.shape
    hidden = w1.shape[1]
    M = B * N

    # Lane-dense padding (multiples of 128) and tile sizing.
    dim_pad = _round_up(dim, 128)
    th_eff = min(th, _round_up(hidden, 128))
    hidden_pad = _round_up(hidden, th_eff)
    tm_eff = min(tm, _round_up(M, 8))
    M_pad = _round_up(M, tm_eff)

    x2d = jnp.pad(x.reshape(M, dim), ((0, M_pad - M), (0, dim_pad - dim)))
    gamma_p = jnp.pad(gamma, (0, dim_pad - dim)).reshape(1, dim_pad)
    beta_p = jnp.pad(beta, (0, dim_pad - dim)).reshape(1, dim_pad)
    w1_p = jnp.pad(w1, ((0, dim_pad - dim), (0, hidden_pad - hidden))
                   ).astype(jnp.bfloat16)
    b1_p = jnp.pad(b1, (0, hidden_pad - hidden)).reshape(1, hidden_pad)
    w2_p = jnp.pad(w2, ((0, hidden_pad - hidden), (0, dim_pad - dim))
                   ).astype(jnp.bfloat16)
    b2_p = jnp.pad(b2, (0, dim_pad - dim)).reshape(1, dim_pad)

    grid = (M_pad // tm_eff, hidden_pad // th_eff)

    # Rough VMEM footprint (double-buffered inputs/outputs + scratch) + slack.
    xbytes = jnp.dtype(x.dtype).itemsize
    est_vmem = (2 * tm_eff * dim_pad * xbytes            # x tile
                + 2 * tm_eff * dim_pad * xbytes          # out tile
                + 2 * dim_pad * th_eff * 2               # w1 (bf16)
                + 2 * th_eff * dim_pad * 2               # w2 (bf16)
                + 2 * (3 * dim_pad + th_eff) * 4         # gamma/beta/b1/b2
                + tm_eff * dim_pad * (2 + 4))            # xn + acc scratch
    vmem_limit = int(min(128 * 1024 * 1024,
                         max(32 * 1024 * 1024, 2 * est_vmem + (4 << 20))))

    kernel = functools.partial(_ffn_kernel, dim_orig=dim, dim_pad=dim_pad)

    out = pl.pallas_call(
        kernel,
        out_shape=jax.ShapeDtypeStruct((M_pad, dim_pad), x.dtype),
        grid_spec=pltpu.PrefetchScalarGridSpec(
            num_scalar_prefetch=0,
            grid=grid,
            in_specs=[
                pl.BlockSpec((tm_eff, dim_pad), lambda i, j: (i, 0)),   # x rows
                pl.BlockSpec((1, dim_pad), lambda i, j: (0, 0)),        # gamma
                pl.BlockSpec((1, dim_pad), lambda i, j: (0, 0)),        # beta
                pl.BlockSpec((dim_pad, th_eff), lambda i, j: (0, j)),   # W1 tile
                pl.BlockSpec((1, th_eff), lambda i, j: (0, j)),         # b1 tile
                pl.BlockSpec((th_eff, dim_pad), lambda i, j: (j, 0)),   # W2 tile
                pl.BlockSpec((1, dim_pad), lambda i, j: (0, 0)),        # b2
            ],
            out_specs=pl.BlockSpec((tm_eff, dim_pad), lambda i, j: (i, 0)),
            scratch_shapes=[
                pltpu.VMEM((tm_eff, dim_pad), jnp.bfloat16),   # LN output (xn)
                pltpu.VMEM((tm_eff, dim_pad), jnp.float32),    # f32 accumulator
            ],
        ),
        compiler_params=pltpu.CompilerParams(
            dimension_semantics=("parallel", "arbitrary"),
            vmem_limit_bytes=vmem_limit,
        ),
    )(x2d, gamma_p, beta_p, w1_p, b1_p, w2_p, b2_p)

    return out[:M, :dim].reshape(B, N, dim)


def _reference(x, gamma, beta, w1, b1, w2, b2):
    xf = x.astype(jnp.float32)
    mean = jnp.mean(xf, axis=-1, keepdims=True)
    var = jnp.mean((xf - mean) ** 2, axis=-1, keepdims=True)
    xn = (xf - mean) / jnp.sqrt(var + LN_EPS) * gamma + beta
    h = xn @ w1 + b1
    h = jax.nn.gelu(h, approximate=False)
    return (h @ w2 + b2).astype(x.dtype)


if __name__ == "__main__":
    # Small shapes implied by the module: tokens x dim features.
    B, N, dim, hidden = 2, 8, 32, 64

    key = jax.random.PRNGKey(0)
    kx, kw1, kb1, kw2, kb2 = jax.random.split(key, 5)

    x = jax.random.normal(kx, (B, N, dim), dtype=jnp.float32)

    # Deterministic parameter init (synthetic, not a checkpoint load).
    gamma = jnp.ones((dim,), jnp.float32)          # LayerNorm weight
    beta = jnp.zeros((dim,), jnp.float32)          # LayerNorm bias
    w1 = jax.random.normal(kw1, (dim, hidden), jnp.float32) * 0.05
    b1 = jax.random.normal(kb1, (hidden,), jnp.float32) * 0.01
    w2 = jax.random.normal(kw2, (hidden, dim), jnp.float32) * 0.05
    b2 = jax.random.normal(kb2, (dim,), jnp.float32) * 0.01

    out = feed_forward(x, gamma, beta, w1, b1, w2, b2)
    out = jax.block_until_ready(out)

    ref = _reference(x, gamma, beta, w1, b1, w2, b2)
    assert out.shape == (B, N, dim)
    # bf16 MXU operands -> looser tolerance than pure-f32.
    assert jnp.allclose(out, ref, atol=2e-2, rtol=2e-2), (
        float(jnp.max(jnp.abs(out - ref))))

    print("KERNEL_OK")
</pallas_src>

<mosaic_0001>
module attributes {stable_mosaic.version = 11 : i64} {
  func.func @_ffn_kernel(%arg0: i32, %arg1: i32, %arg2: memref<16x128xf32, #tpu.memory_space<vmem>>, %arg3: memref<1x128xf32, #tpu.memory_space<vmem>>, %arg4: memref<1x128xf32, #tpu.memory_space<vmem>>, %arg5: memref<128x128xbf16, #tpu.memory_space<vmem>>, %arg6: memref<1x128xf32, #tpu.memory_space<vmem>>, %arg7: memref<128x128xbf16, #tpu.memory_space<vmem>>, %arg8: memref<1x128xf32, #tpu.memory_space<vmem>>, %arg9: memref<16x128xf32, #tpu.memory_space<vmem>>, %arg10: memref<16x128xbf16, #tpu.memory_space<vmem>>, %arg11: memref<16x128xf32, #tpu.memory_space<vmem>>) attributes {dimension_semantics = [#tpu.dimension_semantics<parallel>, #tpu.dimension_semantics<arbitrary>], iteration_bounds = array<i64: 1, 1>, scalar_prefetch = 0 : i64, scratch_operands = 2 : i64, tpu.core_type = #tpu.core_type<tc>, window_params = [{transform_indices = @transform_0, window_bounds = array<i64: 16, 128>}, {pipeline_mode = #tpu.pipeline_mode<synchronous>, transform_indices = @transform_1, window_bounds = array<i64: 1, 128>}, {pipeline_mode = #tpu.pipeline_mode<synchronous>, transform_indices = @transform_2, window_bounds = array<i64: 1, 128>}, {transform_indices = @transform_3, window_bounds = array<i64: 128, 128>}, {transform_indices = @transform_4, window_bounds = array<i64: 1, 128>}, {transform_indices = @transform_5, window_bounds = array<i64: 128, 128>}, {pipeline_mode = #tpu.pipeline_mode<synchronous>, transform_indices = @transform_6, window_bounds = array<i64: 1, 128>}, {transform_indices = @transform_7, window_bounds = array<i64: 16, 128>}]} {
    %c0_i32 = arith.constant 0 : i32
    %0 = arith.cmpi eq, %arg1, %c0_i32 : i32
    %1 = arith.extui %0 : i1 to i32
    %c0_i32_0 = arith.constant 0 : i32
    %2 = arith.cmpi ne, %1, %c0_i32_0 : i32
    scf.if %2 {
      %c0_18 = arith.constant 0 : index
      %c0_19 = arith.constant 0 : index
      %26 = vector.load %arg2[%c0_18, %c0_19] : memref<16x128xf32, #tpu.memory_space<vmem>>, vector<16x128xf32>
      %cst_20 = arith.constant dense<0.000000e+00> : vector<16xf32>
      %27 = vector.multi_reduction <add>, %26, %cst_20 [1] : vector<16x128xf32> to vector<16xf32>
      %28 = vector.shape_cast %27 : vector<16xf32> to vector<16x1xf32>
      %cst_21 = arith.constant 3.125000e-02 : f32
      %29 = vector.broadcast %cst_21 : f32 to vector<16x1xf32>
      %30 = arith.mulf %28, %29 : vector<16x1xf32>
      %31 = vector.broadcast %30 : vector<16x1xf32> to vector<16x128xf32>
      %32 = arith.subf %26, %31 : vector<16x128xf32>
      %33 = tpu.iota {dimensions = array<i32: 1>} : vector<1x128xi32>
      %c32_i32 = arith.constant 32 : i32
      %34 = vector.broadcast %c32_i32 : i32 to vector<1x128xi32>
      %35 = arith.cmpi slt, %33, %34 : vector<1x128xi32>
      %cst_22 = arith.constant 0.000000e+00 : f32
      %36 = vector.shape_cast %35 : vector<1x128xi1> to vector<1x128xi1>
      %37 = vector.broadcast %36 : vector<1x128xi1> to vector<16x128xi1>
      %38 = vector.broadcast %cst_22 : f32 to vector<16x128xf32>
      %39 = arith.select %37, %32, %38 : vector<16x128xi1>, vector<16x128xf32>
      %40 = arith.mulf %39, %39 : vector<16x128xf32>
      %cst_23 = arith.constant dense<0.000000e+00> : vector<16xf32>
      %41 = vector.multi_reduction <add>, %40, %cst_23 [1] : vector<16x128xf32> to vector<16xf32>
      %42 = vector.shape_cast %41 : vector<16xf32> to vector<16x1xf32>
      %cst_24 = arith.constant 3.125000e-02 : f32
      %43 = vector.broadcast %cst_24 : f32 to vector<16x1xf32>
      %44 = arith.mulf %42, %43 : vector<16x1xf32>
      %cst_25 = arith.constant 9.99999974E-6 : f32
      %45 = vector.broadcast %cst_25 : f32 to vector<16x1xf32>
      %46 = arith.addf %44, %45 : vector<16x1xf32>
      %47 = math.rsqrt %46 : vector<16x1xf32>
      %48 = vector.broadcast %47 : vector<16x1xf32> to vector<16x128xf32>
      %49 = arith.mulf %32, %48 : vector<16x128xf32>
      %c0_26 = arith.constant 0 : index
      %c0_27 = arith.constant 0 : index
      %50 = vector.load %arg3[%c0_26, %c0_27] : memref<1x128xf32, #tpu.memory_space<vmem>>, vector<1x128xf32>
      %51 = vector.broadcast %50 : vector<1x128xf32> to vector<16x128xf32>
      %52 = arith.mulf %49, %51 : vector<16x128xf32>
      %c0_28 = arith.constant 0 : index
      %c0_29 = arith.constant 0 : index
      %53 = vector.load %arg4[%c0_28, %c0_29] : memref<1x128xf32, #tpu.memory_space<vmem>>, vector<1x128xf32>
      %54 = vector.broadcast %53 : vector<1x128xf32> to vector<16x128xf32>
      %55 = arith.addf %52, %54 : vector<16x128xf32>
      %56 = arith.truncf %55 : vector<16x128xf32> to vector<16x128xbf16>
      %c0_30 = arith.constant 0 : index
      %c0_31 = arith.constant 0 : index
      %57 = vector.load %arg10[%c0_30, %c0_31] : memref<16x128xbf16, #tpu.memory_space<vmem>>, vector<16x128xbf16>
      tpu.vector_store %arg10[%c0_30, %c0_31], %56 {strides = array<i32>} : memref<16x128xbf16, #tpu.memory_space<vmem>>, vector<16x128xbf16>,
      %cst_32 = arith.constant 0.000000e+00 : f32
      %58 = vector.broadcast %cst_32 : f32 to vector<16x128xf32>
      %c0_33 = arith.constant 0 : index
      %c0_34 = arith.constant 0 : index
      %59 = vector.load %arg11[%c0_33, %c0_34] : memref<16x128xf32, #tpu.memory_space<vmem>>, vector<16x128xf32>
      tpu.vector_store %arg11[%c0_33, %c0_34], %58 {strides = array<i32>} : memref<16x128xf32, #tpu.memory_space<vmem>>, vector<16x128xf32>,
    } else {
    }
    %c0 = arith.constant 0 : index
    %c0_1 = arith.constant 0 : index
    %3 = vector.load %arg10[%c0, %c0_1] : memref<16x128xbf16, #tpu.memory_space<vmem>>, vector<16x128xbf16>
    %c0_2 = arith.constant 0 : index
    %c0_3 = arith.constant 0 : index
    %4 = vector.load %arg5[%c0_2, %c0_3] : memref<128x128xbf16, #tpu.memory_space<vmem>>, vector<128x128xbf16>
    %cst = arith.constant dense<0.000000e+00> : vector<16x128xf32>
    %5 = tpu.matmul %3, %4, %cst {dimension_numbers = #tpu.dot_dimension_numbers<[1], [0], [0], [1], [0, 0, 1, 1], [], []>} : vector<16x128xbf16>, vector<128x128xbf16>, vector<16x128xf32> -> vector<16x128xf32>
    %c0_4 = arith.constant 0 : index
    %c0_5 = arith.constant 0 : index
    %6 = vector.load %arg6[%c0_4, %c0_5] : memref<1x128xf32, #tpu.memory_space<vmem>>, vector<1x128xf32>
    %7 = vector.broadcast %6 : vector<1x128xf32> to vector<16x128xf32>
    %8 = arith.addf %5, %7 : vector<16x128xf32>
    %cst_6 = arith.constant 5.000000e-01 : f32
    %9 = vector.broadcast %cst_6 : f32 to vector<16x128xf32>
    %10 = arith.mulf %9, %8 : vector<16x128xf32>
    %cst_7 = arith.constant 0.707106769 : f32
    %11 = vector.broadcast %cst_7 : f32 to vector<16x128xf32>
    %12 = arith.mulf %8, %11 : vector<16x128xf32>
    %13 = math.erf %12 : vector<16x128xf32>
    %cst_8 = arith.constant 1.000000e+00 : f32
    %14 = vector.broadcast %cst_8 : f32 to vector<16x128xf32>
    %15 = arith.addf %14, %13 : vector<16x128xf32>
    %16 = arith.mulf %10, %15 : vector<16x128xf32>
    %c0_9 = arith.constant 0 : index
    %c0_10 = arith.constant 0 : index
    %17 = vector.load %arg11[%c0_9, %c0_10] : memref<16x128xf32, #tpu.memory_space<vmem>>, vector<16x128xf32>
    %18 = arith.truncf %16 : vector<16x128xf32> to vector<16x128xbf16>
    %c0_11 = arith.constant 0 : index
    %c0_12 = arith.constant 0 : index
    %19 = vector.load %arg7[%c0_11, %c0_12] : memref<128x128xbf16, #tpu.memory_space<vmem>>, vector<128x128xbf16>
    %cst_13 = arith.constant dense<0.000000e+00> : vector<16x128xf32>
    %20 = tpu.matmul %18, %19, %cst_13 {dimension_numbers = #tpu.dot_dimension_numbers<[1], [0], [0], [1], [0, 0, 1, 1], [], []>} : vector<16x128xbf16>, vector<128x128xbf16>, vector<16x128xf32> -> vector<16x128xf32>
    %21 = arith.addf %17, %20 : vector<16x128xf32>
    %c0_14 = arith.constant 0 : index
    %c0_15 = arith.constant 0 : index
    %22 = vector.load %arg11[%c0_14, %c0_15] : memref<16x128xf32, #tpu.memory_space<vmem>>, vector<16x128xf32>
    tpu.vector_store %arg11[%c0_14, %c0_15], %21 {strides = array<i32>} : memref<16x128xf32, #tpu.memory_space<vmem>>, vector<16x128xf32>,
    %c0_i32_16 = arith.constant 0 : i32
    %23 = arith.cmpi eq, %arg1, %c0_i32_16 : i32
    %24 = arith.extui %23 : i1 to i32
    %c0_i32_17 = arith.constant 0 : i32
    %25 = arith.cmpi ne, %24, %c0_i32_17 : i32
    scf.if %25 {
      %c0_18 = arith.constant 0 : index
      %c0_19 = arith.constant 0 : index
      %26 = vector.load %arg11[%c0_18, %c0_19] : memref<16x128xf32, #tpu.memory_space<vmem>>, vector<16x128xf32>
      %c0_20 = arith.constant 0 : index
      %c0_21 = arith.constant 0 : index
      %27 = vector.load %arg8[%c0_20, %c0_21] : memref<1x128xf32, #tpu.memory_space<vmem>>, vector<1x128xf32>
      %28 = vector.broadcast %27 : vector<1x128xf32> to vector<16x128xf32>
      %29 = arith.addf %26, %28 : vector<16x128xf32>
      %c0_22 = arith.constant 0 : index
      %c0_23 = arith.constant 0 : index
      %30 = vector.load %arg9[%c0_22, %c0_23] : memref<16x128xf32, #tpu.memory_space<vmem>>, vector<16x128xf32>
      tpu.vector_store %arg9[%c0_22, %c0_23], %29 {strides = array<i32>} : memref<16x128xf32, #tpu.memory_space<vmem>>, vector<16x128xf32>,
    } else {
    }
    return
  }
  func.func @transform_0(%arg0: i32, %arg1: i32) -> (i32, i32) {
    %c0_i32 = arith.constant 0 : i32
    %c0_i32_0 = arith.constant 0 : i32
    return %arg0, %c0_i32 : i32, i32
  }
  func.func @transform_1(%arg0: i32, %arg1: i32) -> (i32, i32) {
    %c0_i32 = arith.constant 0 : i32
    %c0_i32_0 = arith.constant 0 : i32
    %c0_i32_1 = arith.constant 0 : i32
    return %c0_i32, %c0_i32_0 : i32, i32
  }
  func.func @transform_2(%arg0: i32, %arg1: i32) -> (i32, i32) {
    %c0_i32 = arith.constant 0 : i32
    %c0_i32_0 = arith.constant 0 : i32
    %c0_i32_1 = arith.constant 0 : i32
    return %c0_i32, %c0_i32_0 : i32, i32
  }
  func.func @transform_3(%arg0: i32, %arg1: i32) -> (i32, i32) {
    %c0_i32 = arith.constant 0 : i32
    %c0_i32_0 = arith.constant 0 : i32
    return %c0_i32, %arg1 : i32, i32
  }
  func.func @transform_4(%arg0: i32, %arg1: i32) -> (i32, i32) {
    %c0_i32 = arith.constant 0 : i32
    %c0_i32_0 = arith.constant 0 : i32
    return %c0_i32, %arg1 : i32, i32
  }
  func.func @transform_5(%arg0: i32, %arg1: i32) -> (i32, i32) {
    %c0_i32 = arith.constant 0 : i32
    %c0_i32_0 = arith.constant 0 : i32
    return %arg1, %c0_i32 : i32, i32
  }
  func.func @transform_6(%arg0: i32, %arg1: i32) -> (i32, i32) {
    %c0_i32 = arith.constant 0 : i32
    %c0_i32_0 = arith.constant 0 : i32
    %c0_i32_1 = arith.constant 0 : i32
    return %c0_i32, %c0_i32_0 : i32, i32
  }
  func.func @transform_7(%arg0: i32, %arg1: i32) -> (i32, i32) {
    %c0_i32 = arith.constant 0 : i32
    %c0_i32_0 = arith.constant 0 : i32
    return %arg0, %c0_i32 : i32, i32
  }
}

</mosaic_0001>

<llo_original>
// kernel: feed_forward.1
$region0: #{feed_forward.1}
  #allocation0 [shape = 'u32[]', space=smem, size = 0x4, offset = 0x4, fixed_abs, tag = 'smem constant byte address 0x4 - core index']
  #allocation1 [shape = 'u32[144,128]{1,0:T(1,128)}', space=vmem, size = 0x12000, scoped, tag = 'internal scratch']
  #allocation2 [shape = 'bf16[16,128]{1,0:T(8,128)(2,1)}', space=vmem, size = 0x1000, scoped, tag = 'scratch operand']
  #allocation3 [shape = 'f32[16,128]{1,0:T(8,128)}', space=vmem, size = 0x2000, scoped, tag = 'scratch operand']
  %s0 = inlined_call_operand.vmem [shape: f32[16,128], index: 0, kind: input, shape index: {}]
  %s1 = inlined_call_operand.vmem [shape: f32[1,128], index: 1, kind: input, shape index: {}]
  %s2 = inlined_call_operand.vmem [shape: f32[1,128], index: 2, kind: input, shape index: {}]
  %s3 = inlined_call_operand.vmem [shape: bf16[128,128], index: 3, kind: input, shape index: {}]
  %s4 = inlined_call_operand.vmem [shape: f32[1,128], index: 4, kind: input, shape index: {}]
  %s5 = inlined_call_operand.vmem [shape: bf16[128,128], index: 5, kind: input, shape index: {}]
  %s6 = inlined_call_operand.vmem [shape: f32[1,128], index: 6, kind: input, shape index: {}]
  %s7 = inlined_call_operand.vmem [shape: f32[16,128], index: 7, kind: output, shape index: {}]
  %s8 = sld [smem:[#allocation0]]
  $region46: #{feed_forward.1} parent=0
    _
  %s10 = ssub.s32 1, %s8
  %s11 = scalar_select 0, %s10, %s8
  // Predicated region
  $region2: #{feed_forward.1} parent=0 // pred_check
    _
  $region3: #{feed_forward.1} parent=0 // pred_check_branch
    %13 = sbr.rel (0) target = $region5
  $region4: #{feed_forward.1} parent=0 // pred_region
    _
  $region5: #{feed_forward.1} parent=0 // pred_fallthru
    _
  // Predicated region
  $region6: #{feed_forward.1} parent=0 // pred_check
    _
  $region7: #{feed_forward.1} parent=0 // pred_check_branch
    %15 = sbr.rel (0) target = $region9
  $region8: #{feed_forward.1} parent=0 // pred_region
    _
  $region9: #{feed_forward.1} parent=0 // pred_fallthru
    _
  // Predicated region
  $region10: #{feed_forward.1} parent=0 // pred_check
    _
  $region11: #{feed_forward.1} parent=0 // pred_check_branch
    %17 = sbr.rel (0) target = $region13
  $region12: #{feed_forward.1} parent=0 // pred_region
    _
  $region13: #{feed_forward.1} parent=0 // pred_fallthru
    _
  // Predicated region
  $region14: #{feed_forward.1} parent=0 // pred_check
    _
  $region15: #{feed_forward.1} parent=0 // pred_check_branch
    %19 = sbr.rel (0) target = $region17
  $region16: #{feed_forward.1} parent=0 // pred_region
    _
  $region17: #{feed_forward.1} parent=0 // pred_fallthru
    _
  // Predicated region
  $region18: #{feed_forward.1} parent=0 // pred_check
    _
  $region19: #{feed_forward.1} parent=0 // pred_check_branch
    %21 = sbr.rel (0) target = $region21
  $region20: #{feed_forward.1} parent=0 // pred_region
    _
  $region21: #{feed_forward.1} parent=0 // pred_fallthru
    _
  // Predicated region
  $region22: #{feed_forward.1} parent=0 // pred_check
    _
  $region23: #{feed_forward.1} parent=0 // pred_check_branch
    %23 = sbr.rel (0) target = $region25
  $region24: #{feed_forward.1} parent=0 // pred_region
    _
  $region25: #{feed_forward.1} parent=0 // pred_fallthru
    _
  // Predicated region
  $region26: #{feed_forward.1} parent=0 // pred_check
    _
  $region27: #{feed_forward.1} parent=0 // pred_check_branch
    %25 = sbr.rel (0) target = $region29
  $region28: #{feed_forward.1} parent=0 // pred_region
    _
  $region29: #{feed_forward.1} parent=0 // pred_fallthru
    _
  %p27 = scmp.eq.s32.totalorder 0, 0
  // Predicated region
  $region30: #{feed_forward.1} parent=0 // pred_check
    %p28 = pneg %p27
  $region31: #{feed_forward.1} parent=0 // pred_check_branch
    %30 = sbr.rel (%p28) target = $region33
  $region32: #{feed_forward.1} parent=0 // pred_region
    %v31 = vld [vmem:[%s0] sm:$0xff]
    %v32 = vld [vmem:[%s0 + $0x8] sm:$0xff]
    %33 = vadd.xlane.f32.xlu0 %v31
    %v34 = vpop.xlane.xlu0 %33
    %35 = vadd.xlane.f32.xlu0 %v32
    %v36 = vpop.xlane.xlu0 %35
    %v37 = vmul.f32 %v34, 0.03125
    %v38 = vmul.f32 %v36, 0.03125
    %v39 = vsub.f32 %v31, %v37
    %v40 = vsub.f32 %v32, %v38
    %v41 = vlaneseq
    %v42 = vand.u32 %v41, 127
    %vm43 = vcmp.lt.s32.totalorder %v42, 32
    %v44 = vsel %vm43, 1, 0
    %vm45 = vcmp.eq.s32.totalorder %v44, 1
    %v46 = vsel %vm45, %v39, 0.0
    %v47 = vsel %vm45, %v40, 0.0
    %v48 = vmul.f32 %v46, %v46
    %v49 = vmul.f32 %v47, %v47
    %50 = vadd.xlane.f32.xlu0 %v48
    %v51 = vpop.xlane.xlu0 %50
    %52 = vadd.xlane.f32.xlu0 %v49
    %v53 = vpop.xlane.xlu0 %52
    %v54 = vmul.f32 %v51, 0.03125
    %v55 = vmul.f32 %v53, 0.03125
    %v56 = vadd.f32 %v54, 1e-05
    %v57 = vadd.f32 %v55, 1e-05
    %v58 = vrsqrt.pop %v56
    %v59 = vrsqrt.pop %v57
    %v60 = vmul.f32 %v39, %v58
    %v61 = vmul.f32 %v40, %v59
    %v62 = vld [vmem:[%s1] sm:$0x1]
    %v64 = vlaneseq
    %v65 = vshrl.u32 %v64, 7
    %v66 = vsub.s32 0, %v65
    %v67 = vrot.slane %v62, %v66
    %v69 = vmul.f32 %v60, %v67
    %v70 = vmul.f32 %v61, %v67
    %v71 = vld [vmem:[%s2] sm:$0x1]
    %v73 = vlaneseq
    %v74 = vshrl.u32 %v73, 7
    %v75 = vsub.s32 0, %v74
    %v76 = vrot.slane %v71, %v75
    %v78 = vadd.f32 %v69, %v76
    %v79 = vadd.f32 %v70, %v76
    %v80 = vpack.c.bf16 %v79, %v78
    %v82 = vunpack.c.l.b16 %v80
    %v83 = vunpack.c.h.b16 %v80
    %v84 = vpack.c.b16 %v82, %v82
    %v85 = vpack.c.b16 %v83, %v83
    %88 = vst [vmem:[#allocation2] sm:$0xf] %v84
    %89 = vst [vmem:[#allocation2 + $0x4] sm:$0xf] %v85
    %90 = vst [vmem:[#allocation3] sm:$0xff] 0.0
    %91 = vst [vmem:[#allocation3 + $0x8] sm:$0xff] 0.0
  $region33: #{feed_forward.1} parent=0 // pred_fallthru
    _
  %v92 = vld [vmem:[#allocation2] sm:$0xf]
  %v93 = vld [vmem:[#allocation2 + $0x4] sm:$0xf]
  %v94 = vld [vmem:[%s3] sm:$0xf]
  %v95 = vld [vmem:[%s3 + $0x4] sm:$0xf]
  %v96 = vld [vmem:[%s3 + $0x8] sm:$0xf]
  %v97 = vld [vmem:[%s3 + $0xc] sm:$0xf]
  %v98 = vld [vmem:[%s3 + $0x10] sm:$0xf]
  %v99 = vld [vmem:[%s3 + $0x14] sm:$0xf]
  %v100 = vld [vmem:[%s3 + $0x18] sm:$0xf]
  %v101 = vld [vmem:[%s3 + $0x1c] sm:$0xf]
  %v102 = vld [vmem:[%s3 + $0x20] sm:$0xf]
  %v103 = vld [vmem:[%s3 + $0x24] sm:$0xf]
  %v104 = vld [vmem:[%s3 + $0x28] sm:$0xf]
  %v105 = vld [vmem:[%s3 + $0x2c] sm:$0xf]
  %v106 = vld [vmem:[%s3 + $0x30] sm:$0xf]
  %v107 = vld [vmem:[%s3 + $0x34] sm:$0xf]
  %v108 = vld [vmem:[%s3 + $0x38] sm:$0xf]
  %v109 = vld [vmem:[%s3 + $0x3c] sm:$0xf]
  %v110 = vld [vmem:[%s4] sm:$0x1]
  %v112 = vlaneseq
  %v113 = vshrl.u32 %v112, 7
  %v114 = vsub.s32 0, %v113
  %v115 = vrot.slane %v110, %v114
  %v119 = vunpack.c.l.b16 %v92
  %v120 = vunpack.c.l.b16 %v93
  %v121 = vpack.c.b16 %v120, %v119
  %v139 = vunpack.c.l.b16 %v94
  %v140 = vunpack.c.l.b16 %v95
  %v141 = vunpack.c.l.b16 %v96
  %v142 = vunpack.c.l.b16 %v97
  %v143 = vunpack.c.l.b16 %v98
  %v144 = vunpack.c.l.b16 %v99
  %v145 = vunpack.c.l.b16 %v100
  %v146 = vunpack.c.l.b16 %v101
  %v147 = vunpack.c.l.b16 %v102
  %v148 = vunpack.c.l.b16 %v103
  %v149 = vunpack.c.l.b16 %v104
  %v150 = vunpack.c.l.b16 %v105
  %v151 = vunpack.c.l.b16 %v106
  %v152 = vunpack.c.l.b16 %v107
  %v153 = vunpack.c.l.b16 %v108
  %v154 = vunpack.c.l.b16 %v109
  %v155 = vpack.c.b16 %v140, %v139
  %v156 = vpack.c.b16 %v142, %v141
  %v157 = vpack.c.b16 %v144, %v143
  %v158 = vpack.c.b16 %v146, %v145
  %v159 = vpack.c.b16 %v148, %v147
  %v160 = vpack.c.b16 %v150, %v149
  %v161 = vpack.c.b16 %v152, %v151
  %v162 = vpack.c.b16 %v154, %v153
  %171 = vmatprep.subr.bf16.mxu0 0
  %172 = vmatpush1.bf16.msra.mxu0 %v162
  %173 = vmatprep.subr.bf16.mxu0 0
  %174 = vmatpush1.bf16.msra.mxu0 %v161
  %175 = vmatprep.subr.bf16.mxu0 0
  %176 = vmatpush1.bf16.msra.mxu0 %v160
  %177 = vmatprep.subr.bf16.mxu0 0
  %178 = vmatpush1.bf16.msra.mxu0 %v159
  %179 = vmatprep.subr.bf16.mxu0 0
  %180 = vmatpush1.bf16.msra.mxu0 %v158
  %181 = vmatprep.subr.bf16.mxu0 0
  %182 = vmatpush1.bf16.msra.mxu0 %v157
  %183 = vmatprep.subr.bf16.mxu0 0
  %184 = vmatpush1.bf16.msra.mxu0 %v156
  %185 = vmatprep.subr.bf16.mxu0 0
  %186 = vmatpush1.bf16.msra.mxu0 %v155
  %187 = vmatprep.subr.bf16.mxu0 0
  %188 = vmatpush2.bf16.msra.mxu0 0
  %189 = vmatprep.subr.bf16.mxu0 0
  %190 = vmatpush2.bf16.msra.mxu0 0
  %191 = vmatprep.subr.bf16.mxu0 0
  %192 = vmatpush2.bf16.msra.mxu0 0
  %193 = vmatprep.subr.bf16.mxu0 0
  %194 = vmatpush2.bf16.msra.mxu0 0
  %195 = vmatprep.subr.bf16.mxu0 0
  %196 = vmatpush2.bf16.msra.mxu0 0
  %197 = vmatprep.subr.bf16.mxu0 0
  %198 = vmatpush2.bf16.msra.mxu0 0
  %199 = vmatprep.subr.bf16.mxu0 0
  %200 = vmatpush2.bf16.msra.mxu0 0
  %201 = vmatprep.subr.bf16.mxu0 0
  %202 = vmatpush2.bf16.msra.mxu0 0
  %203 = vmatprep.mubr.bf16.mxu0 0
  %204 = vmatmul.mubr.bf16.gmra.mxu0 %v121
  %v205 = vpop.f32.mrf.mxu0
  %v206 = vadd.f32 %v115, %v205
  %v207 = vpop.f32.mrf.mxu0
  %v208 = vpop.f32.mrf.mxu0
  %v209 = vadd.f32 %v115, %v208
  %v210 = vpop.f32.mrf.mxu0
  %211 = vdwg.mxu0
  %v212 = vmul.f32 %v206, 0.5
  %v213 = vmul.f32 %v209, 0.5
  %v214 = vmul.f32 %v206, 0.70710677
  %v215 = vmul.f32 %v209, 0.70710677
  %v216 = verf.f32.pop %v214
  %v217 = verf.f32.pop %v215
  %v218 = vadd.f32 %v216, 1.0
  %v219 = vadd.f32 %v217, 1.0
  %v220 = vmul.f32 %v212, %v218
  %v221 = vmul.f32 %v213, %v219
  %v222 = vld [vmem:[#allocation3] sm:$0xff]
  %v223 = vld [vmem:[#allocation3 + $0x8] sm:$0xff]
  %v224 = vpack.c.bf16 %v221, %v220
  %v225 = vld [vmem:[%s5] sm:$0xf]
  %v226 = vld [vmem:[%s5 + $0x4] sm:$0xf]
  %v227 = vld [vmem:[%s5 + $0x8] sm:$0xf]
  %v228 = vld [vmem:[%s5 + $0xc] sm:$0xf]
  %v229 = vld [vmem:[%s5 + $0x10] sm:$0xf]
  %v230 = vld [vmem:[%s5 + $0x14] sm:$0xf]
  %v231 = vld [vmem:[%s5 + $0x18] sm:$0xf]
  %v232 = vld [vmem:[%s5 + $0x1c] sm:$0xf]
  %v233 = vld [vmem:[%s5 + $0x20] sm:$0xf]
  %v234 = vld [vmem:[%s5 + $0x24] sm:$0xf]
  %v235 = vld [vmem:[%s5 + $0x28] sm:$0xf]
  %v236 = vld [vmem:[%s5 + $0x2c] sm:$0xf]
  %v237 = vld [vmem:[%s5 + $0x30] sm:$0xf]
  %v238 = vld [vmem:[%s5 + $0x34] sm:$0xf]
  %v239 = vld [vmem:[%s5 + $0x38] sm:$0xf]
  %v240 = vld [vmem:[%s5 + $0x3c] sm:$0xf]
  %v257 = vunpack.c.l.b16 %v225
  %v258 = vunpack.c.l.b16 %v226
  %v259 = vunpack.c.l.b16 %v227
  %v260 = vunpack.c.l.b16 %v228
  %v261 = vunpack.c.l.b16 %v229
  %v262 = vunpack.c.l.b16 %v230
  %v263 = vunpack.c.l.b16 %v231
  %v264 = vunpack.c.l.b16 %v232
  %v265 = vunpack.c.l.b16 %v233
  %v266 = vunpack.c.l.b16 %v234
  %v267 = vunpack.c.l.b16 %v235
  %v268 = vunpack.c.l.b16 %v236
  %v269 = vunpack.c.l.b16 %v237
  %v270 = vunpack.c.l.b16 %v238
  %v271 = vunpack.c.l.b16 %v239
  %v272 = vunpack.c.l.b16 %v240
  %v273 = vpack.c.b16 %v258, %v257
  %v274 = vpack.c.b16 %v260, %v259
  %v275 = vpack.c.b16 %v262, %v261
  %v276 = vpack.c.b16 %v264, %v263
  %v277 = vpack.c.b16 %v266, %v265
  %v278 = vpack.c.b16 %v268, %v267
  %v279 = vpack.c.b16 %v270, %v269
  %v280 = vpack.c.b16 %v272, %v271
  %289 = vmatprep.subr.bf16.mxu0 0
  %290 = vmatpush1.bf16.msra.mxu0 %v280
  %291 = vmatprep.subr.bf16.mxu0 0
  %292 = vmatpush1.bf16.msra.mxu0 %v279
  %293 = vmatprep.subr.bf16.mxu0 0
  %294 = vmatpush1.bf16.msra.mxu0 %v278
  %295 = vmatprep.subr.bf16.mxu0 0
  %296 = vmatpush1.bf16.msra.mxu0 %v277
  %297 = vmatprep.subr.bf16.mxu0 0
  %298 = vmatpush1.bf16.msra.mxu0 %v276
  %299 = vmatprep.subr.bf16.mxu0 0
  %300 = vmatpush1.bf16.msra.mxu0 %v275
  %301 = vmatprep.subr.bf16.mxu0 0
  %302 = vmatpush1.bf16.msra.mxu0 %v274
  %303 = vmatprep.subr.bf16.mxu0 0
  %304 = vmatpush1.bf16.msra.mxu0 %v273
  %305 = vmatprep.subr.bf16.mxu0 0
  %306 = vmatpush2.bf16.msra.mxu0 0
  %307 = vmatprep.subr.bf16.mxu0 0
  %308 = vmatpush2.bf16.msra.mxu0 0
  %309 = vmatprep.subr.bf16.mxu0 0
  %310 = vmatpush2.bf16.msra.mxu0 0
  %311 = vmatprep.subr.bf16.mxu0 0
  %312 = vmatpush2.bf16.msra.mxu0 0
  %313 = vmatprep.subr.bf16.mxu0 0
  %314 = vmatpush2.bf16.msra.mxu0 0
  %315 = vmatprep.subr.bf16.mxu0 0
  %316 = vmatpush2.bf16.msra.mxu0 0
  %317 = vmatprep.subr.bf16.mxu0 0
  %318 = vmatpush2.bf16.msra.mxu0 0
  %319 = vmatprep.subr.bf16.mxu0 0
  %320 = vmatpush2.bf16.msra.mxu0 0
  %321 = vmatprep.mubr.bf16.mxu0 0
  %322 = vmatmul.mubr.bf16.gmra.mxu0 %v224
  %v323 = vpop.f32.mrf.mxu0
  %v324 = vadd.f32 0.0, %v323
  %v325 = vpop.f32.mrf.mxu0
  %v326 = vpop.f32.mrf.mxu0
  %v327 = vadd.f32 0.0, %v326
  %v328 = vpop.f32.mrf.mxu0
  %329 = vdwg.mxu0
  %v330 = vadd.f32 %v222, %v324
  %v331 = vadd.f32 %v223, %v327
  %332 = vst [vmem:[#allocation3] sm:$0xff] %v330
  %333 = vst [vmem:[#allocation3 + $0x8] sm:$0xff] %v331
  // Predicated region
  $region34: #{feed_forward.1} parent=0 // pred_check
    %p334 = pneg %p27
  $region35: #{feed_forward.1} parent=0 // pred_check_branch
    %336 = sbr.rel (%p334) target = $region37
  $region36: #{feed_forward.1} parent=0 // pred_region
    %v337 = vld [vmem:[#allocation3] sm:$0xff]
    %v338 = vld [vmem:[#allocation3 + $0x8] sm:$0xff]
    %v339 = vld [vmem:[%s6] sm:$0x1]
    %v341 = vlaneseq
    %v342 = vshrl.u32 %v341, 7
    %v343 = vsub.s32 0, %v342
    %v344 = vrot.slane %v339, %v343
    %v346 = vadd.f32 %v337, %v344
    %v347 = vadd.f32 %v338, %v344
    %348 = vst [vmem:[%s7] sm:$0xff] %v346
    %349 = vst [vmem:[%s7 + $0x8] sm:$0xff] %v347
  $region37: #{feed_forward.1} parent=0 // pred_fallthru
    _
  // Predicated region
  $region38: #{feed_forward.1} parent=0 // pred_check
    _
  $region39: #{feed_forward.1} parent=0 // pred_check_branch
    %351 = sbr.rel (0) target = $region41
  $region40: #{feed_forward.1} parent=0 // pred_region
    _
  $region41: #{feed_forward.1} parent=0 // pred_fallthru
    _
  // Predicated region
  $region42: #{feed_forward.1} parent=0 // pred_check
    _
  $region43: #{feed_forward.1} parent=0 // pred_check_branch
    %353 = sbr.rel (0) target = $region45
  $region44: #{feed_forward.1} parent=0 // pred_region
    _
  $region45: #{feed_forward.1} parent=0 // pred_fallthru
    _

</llo_original>
